<compile_context>
chip_gen: v5e
topology: v5e:2x2
jax: 0.10.0
libtpu: 0.0.40
codegen_flags: <defaults>
</compile_context>

<pallas_src>
import jax
import jax.numpy as jnp
from jax.experimental import pallas as pl
from jax.experimental.pallas import tpu as pltpu

_LANE = 128
_SUBLANE = 8


def _round_up(n, m):
    return ((n + m - 1) // m) * m


def _leaky_relu(x, slope=0.2):
    return jnp.where(x > 0, x, slope * x)


def label_decoder_kernel(x_ref, w1_ref, b1_ref, w2_ref, b2_ref, w3_ref, b3_ref, o_ref):
    # One batch block, whole MLP fused in VMEM. All feature dims are 128-multiples.
    x = x_ref[...]

    h = jnp.dot(x, w1_ref[...], preferred_element_type=jnp.float32) + b1_ref[...]
    h = _leaky_relu(h)

    h = jnp.dot(h, w2_ref[...], preferred_element_type=jnp.float32) + b2_ref[...]
    h = _leaky_relu(h)

    o = jnp.dot(h, w3_ref[...], preferred_element_type=jnp.float32) + b3_ref[...]
    o_ref[...] = o.astype(o_ref.dtype)


def _pad2(a, rows, cols):
    r, c = a.shape
    return jnp.pad(a, ((0, rows - r), (0, cols - c)))


def label_decoder_forward(x, params, *, block_b=512):
    """x: (B, dim_z) f32. params: weights (in,out), biases (1,out). Returns (B, dim_u)."""
    w1, b1 = params["w1"], params["b1"]
    w2, b2 = params["w2"], params["b2"]
    w3, b3 = params["w3"], params["b3"]

    B, dim_z = x.shape
    hidden = w1.shape[1]
    dim_u = w3.shape[1]

    # Lane-dense padded feature dims (multiples of 128).
    dz_p = _round_up(dim_z, _LANE)
    h_p = _round_up(hidden, _LANE)
    du_p = _round_up(dim_u, _LANE)

    # Batch tile: big blocks for pipelining at large B, but never larger than the
    # (sublane-rounded) batch itself.
    tb = min(block_b, _round_up(B, _SUBLANE))
    b_p = _round_up(B, tb)

    # Zero-pad once in the wrapper. Padded x cols hit zero weight rows; padded
    # weight cols + zero bias entries keep padded features exactly 0 through
    # LeakyReLU, so real output columns are untouched.
    x_p = _pad2(x.astype(jnp.float32), b_p, dz_p)
    w1_p = _pad2(w1, dz_p, h_p)
    b1_p = _pad2(b1, 1, h_p)
    w2_p = _pad2(w2, h_p, h_p)
    b2_p = _pad2(b2, 1, h_p)
    w3_p = _pad2(w3, h_p, du_p)
    b3_p = _pad2(b3, 1, du_p)

    grid = (b_p // tb,)

    out_p = pl.pallas_call(
        label_decoder_kernel,
        out_shape=jax.ShapeDtypeStruct((b_p, du_p), jnp.float32),
        grid_spec=pltpu.PrefetchScalarGridSpec(
            num_scalar_prefetch=0,
            grid=grid,
            in_specs=[
                pl.BlockSpec((tb, dz_p), lambda i: (i, 0)),    # x: streamed per block
                pl.BlockSpec((dz_p, h_p), lambda i: (0, 0)),   # weights/biases: resident
                pl.BlockSpec((1, h_p), lambda i: (0, 0)),
                pl.BlockSpec((h_p, h_p), lambda i: (0, 0)),
                pl.BlockSpec((1, h_p), lambda i: (0, 0)),
                pl.BlockSpec((h_p, du_p), lambda i: (0, 0)),
                pl.BlockSpec((1, du_p), lambda i: (0, 0)),
            ],
            out_specs=pl.BlockSpec((tb, du_p), lambda i: (i, 0)),
        ),
        compiler_params=pltpu.CompilerParams(
            dimension_semantics=("parallel",),  # shard batch blocks across TCs (v7x)
        ),
    )(x_p, w1_p, b1_p, w2_p, b2_p, w3_p, b3_p)

    # Slice away batch + lane padding.
    return out_p[:B, :dim_u]


def init_params(key, dim_z, hidden_nodes, dim_u):
    """Deterministic init matching nn.Linear shapes (Kaiming-uniform-like bounds)."""
    ks = jax.random.split(key, 6)

    def linear(kw, kb, fan_in, fan_out):
        bound = 1.0 / jnp.sqrt(fan_in)
        w = jax.random.uniform(kw, (fan_in, fan_out), jnp.float32, -bound, bound)
        b = jax.random.uniform(kb, (1, fan_out), jnp.float32, -bound, bound)
        return w, b

    w1, b1 = linear(ks[0], ks[1], dim_z, hidden_nodes)
    w2, b2 = linear(ks[2], ks[3], hidden_nodes, hidden_nodes)
    w3, b3 = linear(ks[4], ks[5], hidden_nodes, dim_u)
    return {"w1": w1, "b1": b1, "w2": w2, "b2": b2, "w3": w3, "b3": b3}


def reference_forward(x, p):
    def lrelu(y):
        return jnp.where(y > 0, y, 0.2 * y)

    h = lrelu(x @ p["w1"] + p["b1"])
    h = lrelu(h @ p["w2"] + p["b2"])
    return h @ p["w3"] + p["b3"]


if __name__ == "__main__":
    # Small shapes consistent with the module: dim_z=32, hidden_nodes=64, dim_u=16
    B, dim_z, hidden_nodes, dim_u = 8, 32, 64, 16

    key = jax.random.PRNGKey(0)
    k_x, k_p = jax.random.split(key)
    x = jax.random.normal(k_x, (B, dim_z), jnp.float32)
    params = init_params(k_p, dim_z, hidden_nodes, dim_u)

    out = label_decoder_forward(x, params)
    jax.block_until_ready(out)

    ref = reference_forward(x, params)
    assert out.shape == (B, dim_u)
    assert jnp.allclose(out, ref, atol=1e-4, rtol=1e-4)

    print("KERNEL_OK")
</pallas_src>

<mosaic_0001>
module attributes {stable_mosaic.version = 11 : i64} {
  func.func @label_decoder_kernel(%arg0: i32, %arg1: memref<8x128xf32, #tpu.memory_space<vmem>>, %arg2: memref<128x128xf32, #tpu.memory_space<vmem>>, %arg3: memref<1x128xf32, #tpu.memory_space<vmem>>, %arg4: memref<128x128xf32, #tpu.memory_space<vmem>>, %arg5: memref<1x128xf32, #tpu.memory_space<vmem>>, %arg6: memref<128x128xf32, #tpu.memory_space<vmem>>, %arg7: memref<1x128xf32, #tpu.memory_space<vmem>>, %arg8: memref<8x128xf32, #tpu.memory_space<vmem>>) attributes {dimension_semantics = [#tpu.dimension_semantics<parallel>], iteration_bounds = array<i64: 1>, scalar_prefetch = 0 : i64, scratch_operands = 0 : i64, tpu.core_type = #tpu.core_type<tc>, window_params = [{transform_indices = @transform_0, window_bounds = array<i64: 8, 128>}, {pipeline_mode = #tpu.pipeline_mode<synchronous>, transform_indices = @transform_1, window_bounds = array<i64: 128, 128>}, {pipeline_mode = #tpu.pipeline_mode<synchronous>, transform_indices = @transform_2, window_bounds = array<i64: 1, 128>}, {pipeline_mode = #tpu.pipeline_mode<synchronous>, transform_indices = @transform_3, window_bounds = array<i64: 128, 128>}, {pipeline_mode = #tpu.pipeline_mode<synchronous>, transform_indices = @transform_4, window_bounds = array<i64: 1, 128>}, {pipeline_mode = #tpu.pipeline_mode<synchronous>, transform_indices = @transform_5, window_bounds = array<i64: 128, 128>}, {pipeline_mode = #tpu.pipeline_mode<synchronous>, transform_indices = @transform_6, window_bounds = array<i64: 1, 128>}, {transform_indices = @transform_7, window_bounds = array<i64: 8, 128>}]} {
    %c0 = arith.constant 0 : index
    %c0_0 = arith.constant 0 : index
    %0 = vector.load %arg1[%c0, %c0_0] : memref<8x128xf32, #tpu.memory_space<vmem>>, vector<8x128xf32>
    %c0_1 = arith.constant 0 : index
    %c0_2 = arith.constant 0 : index
    %1 = vector.load %arg2[%c0_1, %c0_2] : memref<128x128xf32, #tpu.memory_space<vmem>>, vector<128x128xf32>
    %cst = arith.constant dense<0.000000e+00> : vector<8x128xf32>
    %2 = tpu.matmul %0, %1, %cst {dimension_numbers = #tpu.dot_dimension_numbers<[1], [0], [0], [1], [0, 0, 1, 1], [], []>} : vector<8x128xf32>, vector<128x128xf32>, vector<8x128xf32> -> vector<8x128xf32>
    %c0_3 = arith.constant 0 : index
    %c0_4 = arith.constant 0 : index
    %3 = vector.load %arg3[%c0_3, %c0_4] : memref<1x128xf32, #tpu.memory_space<vmem>>, vector<1x128xf32>
    %4 = vector.broadcast %3 : vector<1x128xf32> to vector<8x128xf32>
    %5 = arith.addf %2, %4 : vector<8x128xf32>
    %cst_5 = arith.constant 0.000000e+00 : f32
    %6 = vector.broadcast %cst_5 : f32 to vector<8x128xf32>
    %7 = arith.cmpf ogt, %5, %6 : vector<8x128xf32>
    %cst_6 = arith.constant 2.000000e-01 : f32
    %8 = vector.broadcast %cst_6 : f32 to vector<8x128xf32>
    %9 = arith.mulf %8, %5 : vector<8x128xf32>
    %10 = arith.select %7, %5, %9 : vector<8x128xi1>, vector<8x128xf32>
    %c0_7 = arith.constant 0 : index
    %c0_8 = arith.constant 0 : index
    %11 = vector.load %arg4[%c0_7, %c0_8] : memref<128x128xf32, #tpu.memory_space<vmem>>, vector<128x128xf32>
    %cst_9 = arith.constant dense<0.000000e+00> : vector<8x128xf32>
    %12 = tpu.matmul %10, %11, %cst_9 {dimension_numbers = #tpu.dot_dimension_numbers<[1], [0], [0], [1], [0, 0, 1, 1], [], []>} : vector<8x128xf32>, vector<128x128xf32>, vector<8x128xf32> -> vector<8x128xf32>
    %c0_10 = arith.constant 0 : index
    %c0_11 = arith.constant 0 : index
    %13 = vector.load %arg5[%c0_10, %c0_11] : memref<1x128xf32, #tpu.memory_space<vmem>>, vector<1x128xf32>
    %14 = vector.broadcast %13 : vector<1x128xf32> to vector<8x128xf32>
    %15 = arith.addf %12, %14 : vector<8x128xf32>
    %cst_12 = arith.constant 0.000000e+00 : f32
    %16 = vector.broadcast %cst_12 : f32 to vector<8x128xf32>
    %17 = arith.cmpf ogt, %15, %16 : vector<8x128xf32>
    %cst_13 = arith.constant 2.000000e-01 : f32
    %18 = vector.broadcast %cst_13 : f32 to vector<8x128xf32>
    %19 = arith.mulf %18, %15 : vector<8x128xf32>
    %20 = arith.select %17, %15, %19 : vector<8x128xi1>, vector<8x128xf32>
    %c0_14 = arith.constant 0 : index
    %c0_15 = arith.constant 0 : index
    %21 = vector.load %arg6[%c0_14, %c0_15] : memref<128x128xf32, #tpu.memory_space<vmem>>, vector<128x128xf32>
    %cst_16 = arith.constant dense<0.000000e+00> : vector<8x128xf32>
    %22 = tpu.matmul %20, %21, %cst_16 {dimension_numbers = #tpu.dot_dimension_numbers<[1], [0], [0], [1], [0, 0, 1, 1], [], []>} : vector<8x128xf32>, vector<128x128xf32>, vector<8x128xf32> -> vector<8x128xf32>
    %c0_17 = arith.constant 0 : index
    %c0_18 = arith.constant 0 : index
    %23 = vector.load %arg7[%c0_17, %c0_18] : memref<1x128xf32, #tpu.memory_space<vmem>>, vector<1x128xf32>
    %24 = vector.broadcast %23 : vector<1x128xf32> to vector<8x128xf32>
    %25 = arith.addf %22, %24 : vector<8x128xf32>
    %c0_19 = arith.constant 0 : index
    %c0_20 = arith.constant 0 : index
    %26 = vector.load %arg8[%c0_19, %c0_20] : memref<8x128xf32, #tpu.memory_space<vmem>>, vector<8x128xf32>
    tpu.vector_store %arg8[%c0_19, %c0_20], %25 {strides = array<i32>} : memref<8x128xf32, #tpu.memory_space<vmem>>, vector<8x128xf32>,
    return
  }
  func.func @transform_0(%arg0: i32) -> (i32, i32) {
    %c0_i32 = arith.constant 0 : i32
    %c0_i32_0 = arith.constant 0 : i32
    return %arg0, %c0_i32 : i32, i32
  }
  func.func @transform_1(%arg0: i32) -> (i32, i32) {
    %c0_i32 = arith.constant 0 : i32
    %c0_i32_0 = arith.constant 0 : i32
    %c0_i32_1 = arith.constant 0 : i32
    return %c0_i32, %c0_i32_0 : i32, i32
  }
  func.func @transform_2(%arg0: i32) -> (i32, i32) {
    %c0_i32 = arith.constant 0 : i32
    %c0_i32_0 = arith.constant 0 : i32
    %c0_i32_1 = arith.constant 0 : i32
    return %c0_i32, %c0_i32_0 : i32, i32
  }
  func.func @transform_3(%arg0: i32) -> (i32, i32) {
    %c0_i32 = arith.constant 0 : i32
    %c0_i32_0 = arith.constant 0 : i32
    %c0_i32_1 = arith.constant 0 : i32
    return %c0_i32, %c0_i32_0 : i32, i32
  }
  func.func @transform_4(%arg0: i32) -> (i32, i32) {
    %c0_i32 = arith.constant 0 : i32
    %c0_i32_0 = arith.constant 0 : i32
    %c0_i32_1 = arith.constant 0 : i32
    return %c0_i32, %c0_i32_0 : i32, i32
  }
  func.func @transform_5(%arg0: i32) -> (i32, i32) {
    %c0_i32 = arith.constant 0 : i32
    %c0_i32_0 = arith.constant 0 : i32
    %c0_i32_1 = arith.constant 0 : i32
    return %c0_i32, %c0_i32_0 : i32, i32
  }
  func.func @transform_6(%arg0: i32) -> (i32, i32) {
    %c0_i32 = arith.constant 0 : i32
    %c0_i32_0 = arith.constant 0 : i32
    %c0_i32_1 = arith.constant 0 : i32
    return %c0_i32, %c0_i32_0 : i32, i32
  }
  func.func @transform_7(%arg0: i32) -> (i32, i32) {
    %c0_i32 = arith.constant 0 : i32
    %c0_i32_0 = arith.constant 0 : i32
    return %arg0, %c0_i32 : i32, i32
  }
}

</mosaic_0001>

<llo_original>
// kernel: tpu_custom_call.1
$region0: #{tpu_custom_call.1}
  #allocation0 [shape = 'u32[]', space=smem, size = 0x4, offset = 0x4, fixed_abs, tag = 'smem constant byte address 0x4 - core index']
  #allocation1 [shape = 'u32[72,128]{1,0:T(1,128)}', space=vmem, size = 0x9000, scoped, tag = 'internal scratch']
  %s0 = inlined_call_operand.hbm [shape: f32[8,128], index: 0, kind: input, shape index: {}]
  %s1 = inlined_call_operand.hbm [shape: f32[128,128], index: 1, kind: input, shape index: {}]
  %s2 = inlined_call_operand.vmem [shape: f32[1,128], index: 2, kind: input, shape index: {}]
  %s3 = inlined_call_operand.hbm [shape: f32[128,128], index: 3, kind: input, shape index: {}]
  %s4 = inlined_call_operand.vmem [shape: f32[1,128], index: 4, kind: input, shape index: {}]
  %s5 = inlined_call_operand.hbm [shape: f32[128,128], index: 5, kind: input, shape index: {}]
  %s6 = inlined_call_operand.vmem [shape: f32[1,128], index: 6, kind: input, shape index: {}]
  %s7 = inlined_call_operand.hbm [shape: f32[8,128], index: 7, kind: output, shape index: {}]
  %s8 = sld [smem:[#allocation0]]
  $region54: #{tpu_custom_call.1} parent=0
    _
  %s10 = ssub.s32 1, %s8
  %s11 = scalar_select 0, %s10, %s8
  $region1: #{tpu_custom_call.1} parent=0
    #allocation2 [shape = 'u8[4096]{0}', space=vmem, size = 0x1000, scoped, tag = 'input window, operand 0, single buffered']
    #allocation3 [shape = 's32[1]{0}', space=sflag, size = 0x4, scoped, tag = 'scoped memory for tpu_custom_call.1']
    #allocation4 [shape = 's32[1]{0}', space=sflag, size = 0x4, scoped, tag = 'scoped memory for tpu_custom_call.1']
    #allocation5 [shape = 'u8[65536]{0}', space=vmem, size = 0x10000, scoped, tag = 'input window, operand 1, single buffered']
    #allocation6 [shape = 's32[1]{0}', space=sflag, size = 0x4, scoped, tag = 'scoped memory for tpu_custom_call.1']
    #allocation7 [shape = 'u8[65536]{0}', space=vmem, size = 0x10000, scoped, tag = 'input window, operand 3, single buffered']
    #allocation8 [shape = 'u8[65536]{0}', space=vmem, size = 0x10000, scoped, tag = 'input window, operand 5, single buffered']
    #allocation9 [shape = 's32[1]{0}', space=sflag, size = 0x4, scoped, tag = 'scoped memory for tpu_custom_call.1']
    #allocation10 [shape = 'u8[4096]{0}', space=vmem, size = 0x1000, scoped, tag = 'output window, operand 0, single buffered']
    %12 = vsyncpa [#allocation3], 0
    %13 = vsyncpa [#allocation6], 0
    %14 = vsyncpa [#allocation9], 0
    %15 = vsyncpa [#allocation4], 0
    // Predicated region
    $region2: #{tpu_custom_call.1} parent=1 // pred_check
      _
    $region3: #{tpu_custom_call.1} parent=1 // pred_check_branch
      %17 = sbr.rel (0) target = $region5
    $region4: #{tpu_custom_call.1} parent=1 // pred_region
      %19 = vsyncadd [#allocation3], 0
      %s21 = sshll.u32 %s0, 4
      %s22 = int_to_ptr.hbm [resolvable:$true] %s21
      %s23 = sshll.u32 [#allocation2], 4
      %s24 = int_to_ptr.vmem [resolvable:$true] %s23
      %26 = dma.hbm_to_vmem [thread:$0]  %s22, 128, %s24, [#allocation3]
    $region5: #{tpu_custom_call.1} parent=1 // pred_fallthru
      _
    // Predicated region
    $region6: #{tpu_custom_call.1} parent=1 // pred_check
      _
    $region7: #{tpu_custom_call.1} parent=1 // pred_check_branch
      %28 = sbr.rel (0) target = $region9
    $region8: #{tpu_custom_call.1} parent=1 // pred_region
      %30 = vsyncadd [#allocation6], 0
      %s31 = sshll.u32 %s1, 4
      %s32 = int_to_ptr.hbm [resolvable:$true] %s31
      %s33 = sshll.u32 [#allocation5], 4
      %s34 = int_to_ptr.vmem [resolvable:$true] %s33
      %39 = dma.hbm_to_vmem [thread:$0]  %s32, 2048, %s34, [#allocation6], 128, 128, 8
    $region9: #{tpu_custom_call.1} parent=1 // pred_fallthru
      _
    // Predicated region
    $region10: #{tpu_custom_call.1} parent=1 // pred_check
      _
    $region11: #{tpu_custom_call.1} parent=1 // pred_check_branch
      %41 = sbr.rel (0) target = $region13
    $region12: #{tpu_custom_call.1} parent=1 // pred_region
      _
    $region13: #{tpu_custom_call.1} parent=1 // pred_fallthru
      _
    // Predicated region
    $region14: #{tpu_custom_call.1} parent=1 // pred_check
      _
    $region15: #{tpu_custom_call.1} parent=1 // pred_check_branch
      %43 = sbr.rel (0) target = $region17
    $region16: #{tpu_custom_call.1} parent=1 // pred_region
      %45 = vsyncadd [#allocation6], 0
      %s46 = sshll.u32 %s3, 4
      %s47 = int_to_ptr.hbm [resolvable:$true] %s46
      %s48 = sshll.u32 [#allocation7], 4
      %s49 = int_to_ptr.vmem [resolvable:$true] %s48
      %54 = dma.hbm_to_vmem [thread:$0]  %s47, 2048, %s49, [#allocation6], 128, 128, 8
    $region17: #{tpu_custom_call.1} parent=1 // pred_fallthru
      _
    // Predicated region
    $region18: #{tpu_custom_call.1} parent=1 // pred_check
      _
    $region19: #{tpu_custom_call.1} parent=1 // pred_check_branch
      %56 = sbr.rel (0) target = $region21
    $region20: #{tpu_custom_call.1} parent=1 // pred_region
      _
    $region21: #{tpu_custom_call.1} parent=1 // pred_fallthru
      _
    // Predicated region
    $region22: #{tpu_custom_call.1} parent=1 // pred_check
      _
    $region23: #{tpu_custom_call.1} parent=1 // pred_check_branch
      %58 = sbr.rel (0) target = $region25
    $region24: #{tpu_custom_call.1} parent=1 // pred_region
      %60 = vsyncadd [#allocation9], 0
      %s61 = sshll.u32 %s5, 4
      %s62 = int_to_ptr.hbm [resolvable:$true] %s61
      %s63 = sshll.u32 [#allocation8], 4
      %s64 = int_to_ptr.vmem [resolvable:$true] %s63
      %69 = dma.hbm_to_vmem [thread:$0]  %s62, 2048, %s64, [#allocation9], 128, 128, 8
    $region25: #{tpu_custom_call.1} parent=1 // pred_fallthru
      _
    // Predicated region
    $region26: #{tpu_custom_call.1} parent=1 // pred_check
      _
    $region27: #{tpu_custom_call.1} parent=1 // pred_check_branch
      %71 = sbr.rel (0) target = $region29
    $region28: #{tpu_custom_call.1} parent=1 // pred_region
      _
    $region29: #{tpu_custom_call.1} parent=1 // pred_fallthru
      _
    // Predicated region
    $region30: #{tpu_custom_call.1} parent=1 // pred_check
      _
    $region31: #{tpu_custom_call.1} parent=1 // pred_check_branch
      %73 = sbr.rel (0) target = $region33
    $region32: #{tpu_custom_call.1} parent=1 // pred_region
      %75 = dma.done [#allocation3], 128
    $region33: #{tpu_custom_call.1} parent=1 // pred_fallthru
      _
    // Predicated region
    $region34: #{tpu_custom_call.1} parent=1 // pred_check
      _
    $region35: #{tpu_custom_call.1} parent=1 // pred_check_branch
      %77 = sbr.rel (0) target = $region37
    $region36: #{tpu_custom_call.1} parent=1 // pred_region
      %79 = dma.done [#allocation6], 2048
    $region37: #{tpu_custom_call.1} parent=1 // pred_fallthru
      _
    // Predicated region
    $region38: #{tpu_custom_call.1} parent=1 // pred_check
      _
    $region39: #{tpu_custom_call.1} parent=1 // pred_check_branch
      %81 = sbr.rel (0) target = $region41
    $region40: #{tpu_custom_call.1} parent=1 // pred_region
      %83 = dma.done [#allocation6], 2048
    $region41: #{tpu_custom_call.1} parent=1 // pred_fallthru
      _
    // Predicated region
    $region42: #{tpu_custom_call.1} parent=1 // pred_check
      _
    $region43: #{tpu_custom_call.1} parent=1 // pred_check_branch
      %85 = sbr.rel (0) target = $region45
    $region44: #{tpu_custom_call.1} parent=1 // pred_region
      %87 = dma.done [#allocation9], 2048
    $region45: #{tpu_custom_call.1} parent=1 // pred_fallthru
      _
    %v88 = vld [vmem:[#allocation2] sm:$0xff]
    %v89 = vld [vmem:[#allocation5] sm:$0xff]
    %v90 = vld [vmem:[#allocation5 + $0x8] sm:$0xff]
    %v91 = vld [vmem:[#allocation5 + $0x10] sm:$0xff]
    %v92 = vld [vmem:[#allocation5 + $0x18] sm:$0xff]
    %v93 = vld [vmem:[#allocation5 + $0x20] sm:$0xff]
    %v94 = vld [vmem:[#allocation5 + $0x28] sm:$0xff]
    %v95 = vld [vmem:[#allocation5 + $0x30] sm:$0xff]
    %v96 = vld [vmem:[#allocation5 + $0x38] sm:$0xff]
    %v97 = vld [vmem:[#allocation5 + $0x40] sm:$0xff]
    %v98 = vld [vmem:[#allocation5 + $0x48] sm:$0xff]
    %v99 = vld [vmem:[#allocation5 + $0x50] sm:$0xff]
    %v100 = vld [vmem:[#allocation5 + $0x58] sm:$0xff]
    %v101 = vld [vmem:[#allocation5 + $0x60] sm:$0xff]
    %v102 = vld [vmem:[#allocation5 + $0x68] sm:$0xff]
    %v103 = vld [vmem:[#allocation5 + $0x70] sm:$0xff]
    %v104 = vld [vmem:[#allocation5 + $0x78] sm:$0xff]
    %v105 = vld [vmem:[%s2] sm:$0x1]
    %v107 = vperm.slane %v105, 0
    %109 = vmatpush.msra.mxu0 %v104
    %110 = vmatpush.msra.mxu0 %v103
    %111 = vmatpush.msra.mxu0 %v102
    %112 = vmatpush.msra.mxu0 %v101
    %113 = vmatpush.msra.mxu0 %v100
    %114 = vmatpush.msra.mxu0 %v99
    %115 = vmatpush.msra.mxu0 %v98
    %116 = vmatpush.msra.mxu0 %v97
    %117 = vmatpush.msra.mxu0 %v96
    %118 = vmatpush.msra.mxu0 %v95
    %119 = vmatpush.msra.mxu0 %v94
    %120 = vmatpush.msra.mxu0 %v93
    %121 = vmatpush.msra.mxu0 %v92
    %122 = vmatpush.msra.mxu0 %v91
    %123 = vmatpush.msra.mxu0 %v90
    %124 = vmatpush.msra.mxu0 %v89
    %125 = vmatmul.f32.gmra.mxu0 %v88
    %v126 = vpop.f32.mrf.mxu0
    %v127 = vadd.f32 %v107, %v126
    %128 = vdwg.mxu0
    %vm129 = vcmp.gt.f32.partialorder %v127, 0.0
    %v130 = vmul.f32 %v127, 0.2
    %v131 = vsel %vm129, %v127, %v130
    %v132 = vld [vmem:[#allocation7] sm:$0xff]
    %v133 = vld [vmem:[#allocation7 + $0x8] sm:$0xff]
    %v134 = vld [vmem:[#allocation7 + $0x10] sm:$0xff]
    %v135 = vld [vmem:[#allocation7 + $0x18] sm:$0xff]
    %v136 = vld [vmem:[#allocation7 + $0x20] sm:$0xff]
    %v137 = vld [vmem:[#allocation7 + $0x28] sm:$0xff]
    %v138 = vld [vmem:[#allocation7 + $0x30] sm:$0xff]
    %v139 = vld [vmem:[#allocation7 + $0x38] sm:$0xff]
    %v140 = vld [vmem:[#allocation7 + $0x40] sm:$0xff]
    %v141 = vld [vmem:[#allocation7 + $0x48] sm:$0xff]
    %v142 = vld [vmem:[#allocation7 + $0x50] sm:$0xff]
    %v143 = vld [vmem:[#allocation7 + $0x58] sm:$0xff]
    %v144 = vld [vmem:[#allocation7 + $0x60] sm:$0xff]
    %v145 = vld [vmem:[#allocation7 + $0x68] sm:$0xff]
    %v146 = vld [vmem:[#allocation7 + $0x70] sm:$0xff]
    %v147 = vld [vmem:[#allocation7 + $0x78] sm:$0xff]
    %v148 = vld [vmem:[%s4] sm:$0x1]
    %v150 = vperm.slane %v148, 0
    %152 = vmatpush.msra.mxu0 %v147
    %153 = vmatpush.msra.mxu0 %v146
    %154 = vmatpush.msra.mxu0 %v145
    %155 = vmatpush.msra.mxu0 %v144
    %156 = vmatpush.msra.mxu0 %v143
    %157 = vmatpush.msra.mxu0 %v142
    %158 = vmatpush.msra.mxu0 %v141
    %159 = vmatpush.msra.mxu0 %v140
    %160 = vmatpush.msra.mxu0 %v139
    %161 = vmatpush.msra.mxu0 %v138
    %162 = vmatpush.msra.mxu0 %v137
    %163 = vmatpush.msra.mxu0 %v136
    %164 = vmatpush.msra.mxu0 %v135
    %165 = vmatpush.msra.mxu0 %v134
    %166 = vmatpush.msra.mxu0 %v133
    %167 = vmatpush.msra.mxu0 %v132
    %168 = vmatmul.f32.gmra.mxu0 %v131
    %v169 = vpop.f32.mrf.mxu0
    %v170 = vadd.f32 %v150, %v169
    %171 = vdwg.mxu0
    %vm172 = vcmp.gt.f32.partialorder %v170, 0.0
    %v173 = vmul.f32 %v170, 0.2
    %v174 = vsel %vm172, %v170, %v173
    %v175 = vld [vmem:[#allocation8] sm:$0xff]
    %v176 = vld [vmem:[#allocation8 + $0x8] sm:$0xff]
    %v177 = vld [vmem:[#allocation8 + $0x10] sm:$0xff]
    %v178 = vld [vmem:[#allocation8 + $0x18] sm:$0xff]
    %v179 = vld [vmem:[#allocation8 + $0x20] sm:$0xff]
    %v180 = vld [vmem:[#allocation8 + $0x28] sm:$0xff]
    %v181 = vld [vmem:[#allocation8 + $0x30] sm:$0xff]
    %v182 = vld [vmem:[#allocation8 + $0x38] sm:$0xff]
    %v183 = vld [vmem:[#allocation8 + $0x40] sm:$0xff]
    %v184 = vld [vmem:[#allocation8 + $0x48] sm:$0xff]
    %v185 = vld [vmem:[#allocation8 + $0x50] sm:$0xff]
    %v186 = vld [vmem:[#allocation8 + $0x58] sm:$0xff]
    %v187 = vld [vmem:[#allocation8 + $0x60] sm:$0xff]
    %v188 = vld [vmem:[#allocation8 + $0x68] sm:$0xff]
    %v189 = vld [vmem:[#allocation8 + $0x70] sm:$0xff]
    %v190 = vld [vmem:[#allocation8 + $0x78] sm:$0xff]
    %v191 = vld [vmem:[%s6] sm:$0x1]
    %v193 = vperm.slane %v191, 0
    %195 = vmatpush.msra.mxu0 %v190
    %196 = vmatpush.msra.mxu0 %v189
    %197 = vmatpush.msra.mxu0 %v188
    %198 = vmatpush.msra.mxu0 %v187
    %199 = vmatpush.msra.mxu0 %v186
    %200 = vmatpush.msra.mxu0 %v185
    %201 = vmatpush.msra.mxu0 %v184
    %202 = vmatpush.msra.mxu0 %v183
    %203 = vmatpush.msra.mxu0 %v182
    %204 = vmatpush.msra.mxu0 %v181
    %205 = vmatpush.msra.mxu0 %v180
    %206 = vmatpush.msra.mxu0 %v179
    %207 = vmatpush.msra.mxu0 %v178
    %208 = vmatpush.msra.mxu0 %v177
    %209 = vmatpush.msra.mxu0 %v176
    %210 = vmatpush.msra.mxu0 %v175
    %211 = vmatmul.f32.gmra.mxu0 %v174
    %v212 = vpop.f32.mrf.mxu0
    %v213 = vadd.f32 %v193, %v212
    %214 = vdwg.mxu0
    %215 = vst [vmem:[#allocation10] sm:$0xff] %v213
    // Predicated region
    $region46: #{tpu_custom_call.1} parent=1 // pred_check
      _
    $region47: #{tpu_custom_call.1} parent=1 // pred_check_branch
      %217 = sbr.rel (0) target = $region49
    $region48: #{tpu_custom_call.1} parent=1 // pred_region
      %219 = vsyncadd [#allocation4], 0
      %s221 = sshll.u32 [#allocation10], 4
      %s222 = int_to_ptr.vmem [resolvable:$true] %s221
      %s223 = sshll.u32 %s7, 4
      %s224 = int_to_ptr.hbm [resolvable:$true] %s223
      %226 = dma.vmem_to_hbm [thread:$0]  %s222, 128, %s224, [#allocation4]
    $region49: #{tpu_custom_call.1} parent=1 // pred_fallthru
      _
    // Predicated region
    $region50: #{tpu_custom_call.1} parent=1 // pred_check
      _
    $region51: #{tpu_custom_call.1} parent=1 // pred_check_branch
      %228 = sbr.rel (0) target = $region53
    $region52: #{tpu_custom_call.1} parent=1 // pred_region
      %230 = dma.done [#allocation4], 128
    $region53: #{tpu_custom_call.1} parent=1 // pred_fallthru
      _
    %231 = vsyncpa [#allocation3], 1
    %232 = vsyncpa [#allocation6], 1
    %233 = vsyncpa [#allocation9], 1
    %234 = vsyncpa [#allocation4], 1

</llo_original>
